<compile_context>
chip_gen: v5e
topology: v5e:2x2
jax: 0.10.0
libtpu: 0.0.40
codegen_flags: <defaults>
</compile_context>

<pallas_src>
import math

import jax
import jax.numpy as jnp
from jax import lax
from jax.experimental import pallas as pl
from jax.experimental.pallas import tpu as pltpu

BN_EPS = 1e-5
LANE = 128           # channel padding target (TPU lane width)
TILE_P_CAP = 1024    # spatial rows per plain 1x1-conv tile (multiple of 8)
TILE_H3_CAP = 32     # output rows per 3x3-conv tile
TILE_TD_CAP = 32     # fine output rows per fused top-down tile


def _round_up(x, m):
    return (x + m - 1) // m * m


def _pick_row_tile(p, cap):
    """Largest multiple of 8 <= cap that divides round_up(p, 8)."""
    p8 = _round_up(p, 8)
    best, d = 8, 8
    limit = min(cap, p8)
    while d <= limit:
        if p8 % d == 0:
            best = d
        d += 8
    return best, p8


# ----------------------------- Pallas kernels -------------------------------

def _conv1x1_kernel(x_ref, w_ref, t_ref, o_ref):
    # x: (1, TP, Kp) bf16 ; w: (Kp, Cp) bf16 (BN scale folded) ; t: (1, Cp) f32
    y = jnp.dot(x_ref[0], w_ref[...], preferred_element_type=jnp.float32)
    o_ref[0] = (y + t_ref[...]).astype(o_ref.dtype)


def _conv1x1_add_kernel(x_ref, r_ref, w_ref, t_ref, o_ref):
    # fallback (no spatial resize): lateral 1x1 conv + BN shift + residual add
    y = jnp.dot(x_ref[0], w_ref[...], preferred_element_type=jnp.float32)
    o_ref[0] = (y + t_ref[...] + r_ref[0].astype(jnp.float32)).astype(o_ref.dtype)


def _topdown_kernel(x_ref, c_ref, aw_ref, wt_ref, t_ref, o_ref):
    """Fused FPN top-down step for one tile of `th` fine rows:
         out = (feat @ W1x1 + shift) + bilinear_2x_upsample(coarse)
    x : (1, th*W, Kp) bf16  flattened fine-level rows (lateral input)
    c : (1, hp, w, Cp) bf16 coarse level, edge-padded rows (resident per n)
    aw: (W, w) f32          width interpolation matrix (align_corners=False)
    wt: (Kp, Cp) bf16 ; t: (1, Cp) f32 ; o: (1, th, W, Cp) bf16
    """
    th, W, Cp = o_ref.shape[1], o_ref.shape[2], o_ref.shape[3]
    th2 = th // 2
    # lateral 1x1 conv + BN shift: one full-tile MXU matmul
    lat = jnp.dot(x_ref[0], wt_ref[...], preferred_element_type=jnp.float32)
    lat = lat.reshape(th, W, Cp) + t_ref[...]
    # coarse rows feeding this tile: padded rows [y0, y0 + th2 + 2)
    y0 = pl.program_id(1) * th2
    cw = c_ref[0, pl.ds(y0, th2 + 2), :, :].astype(jnp.float32)    # (th2+2, w, Cp)
    aw = aw_ref[...]
    # width pass: small resident-matrix matmuls (matrix encodes edge clamping)
    wide = jnp.stack(
        [jnp.dot(aw, cw[j], preferred_element_type=jnp.float32)
         for j in range(th2 + 2)], axis=0)                          # (th2+2, W, Cp)
    # height pass: exact 2x bilinear (align_corners=False) -> 0.25/0.75 blends.
    # padded window row j corresponds to coarse row (y0 + j - 1), edge-clamped.
    prev, curr, nxt = wide[0:th2], wide[1:th2 + 1], wide[2:th2 + 2]
    even = 0.25 * prev + 0.75 * curr            # fine rows 2y
    odd = 0.75 * curr + 0.25 * nxt              # fine rows 2y+1
    up = jnp.stack([even, odd], axis=1).reshape(th, W, Cp)          # row interleave
    o_ref[0] = (lat + up).astype(o_ref.dtype)


def _conv3x3_kernel(x_ref, w_ref, t_ref, o_ref):
    """3x3 same-pad conv + BN shift for one tile of `th` output rows.
    x: (1, Hp+2, W+2, Cp) bf16  zero-padded activation, resident per batch elem
    w: (9*Cp, Cp) bf16  ((ky, kx, cin)-major) ; t: (1, Cp) f32
    o: (1, th, W, Cp) bf16
    Computed as 9 accumulated full-tile MXU matmuls on shifted slices of the
    in-VMEM halo window — no per-row matmuls, no HBM im2col / halo gather.
    """
    th, wd, Cp = o_ref.shape[1], o_ref.shape[2], o_ref.shape[3]
    row0 = pl.multiple_of(pl.program_id(1) * th, 8)
    xt = x_ref[0, pl.ds(row0, th + 2), :, :]                 # (th+2, W+2, Cp) bf16
    acc = jnp.zeros((th * wd, Cp), jnp.float32)
    for ky in range(3):
        for kx in range(3):
            patch = xt[ky:ky + th, kx:kx + wd, :].reshape(th * wd, Cp)
            wk = w_ref[(3 * ky + kx) * Cp:(3 * ky + kx + 1) * Cp, :]
            acc = acc + jnp.dot(patch, wk, preferred_element_type=jnp.float32)
    y = acc + t_ref[...]
    o_ref[0] = y.reshape(th, wd, Cp).astype(o_ref.dtype)


# ----------------------------- Pallas wrappers -------------------------------

def conv1x1_bn(x_nhwc, p, residual=None):
    """1x1 conv + folded-BN shift (+ optional same-resolution residual add).
    Returns (N, H, W, Cp) bf16."""
    N, H, W, Cin = x_nhwc.shape
    w = p["w_pad"]            # (Kp, Cp) bf16, BN scale folded in
    t = p["t_pad"]            # (1, Cp) f32
    Kp, Cp = w.shape
    P = H * W
    tile_p, p_pad = _pick_row_tile(P, TILE_P_CAP)
    n_p = p_pad // tile_p

    xf = x_nhwc.astype(jnp.bfloat16).reshape(N, P, Cin)
    if p_pad != P or Kp != Cin:
        xf = jnp.pad(xf, ((0, 0), (0, p_pad - P), (0, Kp - Cin)))

    in_specs = [pl.BlockSpec((1, tile_p, Kp), lambda n, pi: (n, pi, 0))]
    args = [xf]
    if residual is not None:
        rf = residual.astype(jnp.bfloat16).reshape(N, P, Cp)
        if p_pad != P:
            rf = jnp.pad(rf, ((0, 0), (0, p_pad - P), (0, 0)))
        in_specs.append(pl.BlockSpec((1, tile_p, Cp), lambda n, pi: (n, pi, 0)))
        args.append(rf)
    in_specs += [pl.BlockSpec((Kp, Cp), lambda n, pi: (0, 0)),
                 pl.BlockSpec((1, Cp), lambda n, pi: (0, 0))]
    args += [w, t]

    kernel = _conv1x1_kernel if residual is None else _conv1x1_add_kernel
    yf = pl.pallas_call(
        kernel,
        out_shape=jax.ShapeDtypeStruct((N, p_pad, Cp), jnp.bfloat16),
        grid=(N, n_p),
        in_specs=in_specs,
        out_specs=pl.BlockSpec((1, tile_p, Cp), lambda n, pi: (n, pi, 0)),
        compiler_params=pltpu.CompilerParams(
            dimension_semantics=("parallel", "parallel")),
    )(*args)
    if p_pad != P:
        yf = yf[:, :P, :]
    return yf.reshape(N, H, W, Cp)


def topdown_fuse(feat, coarse, p):
    """Fused FPN top-down step: bilinear 2x upsample(coarse) + 1x1(feat) + add.
    feat: (N, H, W, Cin), coarse: (N, h, w, Cp) bf16 with H == 2h.
    The upsampled full-resolution tensor never touches HBM."""
    N, H, W, Cin = feat.shape
    _, h, w, Cp = coarse.shape
    wgt = p["w_pad"]
    t = p["t_pad"]
    Kp = wgt.shape[0]
    # F.interpolate(scale_factor=2) in the reference module => exact 2x height.
    assert H == 2 * h, f"fused top-down assumes exact 2x height (H={H}, h={h})"

    th, H_pad = _pick_row_tile(H, TILE_TD_CAP)
    n_t = H_pad // th

    xf = feat.astype(jnp.bfloat16).reshape(N, H * W, Cin)
    if H_pad != H or Kp != Cin:
        xf = jnp.pad(xf, ((0, 0), (0, (H_pad - H) * W), (0, Kp - Cin)))

    # edge-padded coarse rows: row 0 = top clamp, rows beyond h = bottom clamp.
    hp = H_pad // 2 + 2
    cpad = jnp.pad(coarse.astype(jnp.bfloat16),
                   ((0, 0), (1, hp - 1 - h), (0, 0), (0, 0)), mode="edge")
    a_w = _bilinear_matrix(W, w)          # f32; handles any W/w ratio + clamping

    out = pl.pallas_call(
        _topdown_kernel,
        out_shape=jax.ShapeDtypeStruct((N, H_pad, W, Cp), jnp.bfloat16),
        grid=(N, n_t),
        in_specs=[pl.BlockSpec((1, th * W, Kp), lambda n, ti: (n, ti, 0)),
                  pl.BlockSpec((1, hp, w, Cp), lambda n, ti: (n, 0, 0, 0)),
                  pl.BlockSpec((W, w), lambda n, ti: (0, 0)),
                  pl.BlockSpec((Kp, Cp), lambda n, ti: (0, 0)),
                  pl.BlockSpec((1, Cp), lambda n, ti: (0, 0))],
        out_specs=pl.BlockSpec((1, th, W, Cp), lambda n, ti: (n, ti, 0, 0)),
        compiler_params=pltpu.CompilerParams(
            dimension_semantics=("parallel", "arbitrary")),
    )(xf, cpad, a_w, wgt, t)
    return out if H_pad == H else out[:, :H]


def conv3x3_bn(z, p):
    """3x3 same-pad conv + folded-BN shift on (N,H,W,Cp) bf16 -> bf16.
    The zero-padded activation is resident in VMEM per batch element (constant
    index map over the row-tile axis); each grid step slices its (th+2)-row
    halo window in-VMEM.  No HBM halo gather / im2col."""
    N, H, W, Cp = z.shape
    wf = p["w_pad"]          # (9*Cp, Cp) bf16
    t = p["t_pad"]           # (1, Cp) f32
    th, h_pad = _pick_row_tile(H, TILE_H3_CAP)
    n_t = h_pad // th
    zp = jnp.pad(z.astype(jnp.bfloat16),
                 ((0, 0), (1, h_pad - H + 1), (1, 1), (0, 0)))
    # NOTE: for very large H*W*Cp the resident block should switch to a manual
    # halo DMA (pl.ANY + make_async_copy); FPN-level sizes fit VMEM comfortably.
    out = pl.pallas_call(
        _conv3x3_kernel,
        out_shape=jax.ShapeDtypeStruct((N, h_pad, W, Cp), jnp.bfloat16),
        grid=(N, n_t),
        in_specs=[pl.BlockSpec((1, h_pad + 2, W + 2, Cp),
                               lambda n, ti: (n, 0, 0, 0)),
                  pl.BlockSpec((9 * Cp, Cp), lambda n, ti: (0, 0)),
                  pl.BlockSpec((1, Cp), lambda n, ti: (0, 0))],
        out_specs=pl.BlockSpec((1, th, W, Cp), lambda n, ti: (n, ti, 0, 0)),
        compiler_params=pltpu.CompilerParams(
            dimension_semantics=("parallel", "arbitrary")),
    )(zp, wf, t)
    return out if h_pad == H else out[:, :H]


def _bilinear_matrix(out_size, in_size):
    """F.interpolate(mode='bilinear', align_corners=False) along one axis."""
    i = jnp.arange(out_size, dtype=jnp.float32)
    src = jnp.maximum((i + 0.5) * (in_size / out_size) - 0.5, 0.0)
    i0 = jnp.clip(jnp.floor(src).astype(jnp.int32), 0, in_size - 1)
    i1 = jnp.clip(i0 + 1, 0, in_size - 1)
    w1 = src - i0.astype(jnp.float32)
    w0 = 1.0 - w1
    A = jnp.zeros((out_size, in_size), jnp.float32)
    rows = jnp.arange(out_size)
    A = A.at[rows, i0].add(w0)
    A = A.at[rows, i1].add(w1)
    return A


# ----------------------------- parameters ------------------------------------

def make_fpn_params(key, in_channels_list, out_channels):
    """Kaiming-uniform(a=1) conv weights, zero bias, freshly-initialized BN
    folded as: scale -> weight columns, shift -> additive term.  Keeps padded
    bf16 kernel copies and logical f32 copies (for the reference)."""
    cpad = _round_up(out_channels, LANE)
    params = {"inner": [], "layer": [], "out_channels": out_channels, "cpad": cpad}
    s = 1.0 / jnp.sqrt(jnp.ones((out_channels,), jnp.float32) + BN_EPS)
    t = jnp.zeros((out_channels,), jnp.float32)   # (bias - mean) * s + beta = 0
    t_pad = jnp.pad(t, (0, cpad - out_channels)).reshape(1, cpad)
    for in_ch in in_channels_list:
        key, k1, k2 = jax.random.split(key, 3)
        b1 = math.sqrt(6.0 / (2.0 * in_ch))
        w1 = jax.random.uniform(k1, (in_ch, out_channels), jnp.float32, -b1, b1)
        b3 = math.sqrt(6.0 / (2.0 * out_channels * 9))
        w3 = jax.random.uniform(k2, (3, 3, out_channels, out_channels),
                                jnp.float32, -b3, b3)
        w1f = (w1 * s[None, :]).astype(jnp.bfloat16)
        w3f = (w3 * s[None, None, None, :]).astype(jnp.bfloat16)
        kpad = _round_up(in_ch, LANE)
        params["inner"].append({
            "w": w1f.astype(jnp.float32), "t": t,
            "w_pad": jnp.pad(w1f, ((0, kpad - in_ch), (0, cpad - out_channels))),
            "t_pad": t_pad,
        })
        w3p = jnp.pad(w3f, ((0, 0), (0, 0),
                            (0, cpad - out_channels), (0, cpad - out_channels)))
        params["layer"].append({
            "w": w3f.astype(jnp.float32), "t": t,
            "w_pad": w3p.reshape(9 * cpad, cpad),
            "t_pad": t_pad,
        })
    return params


# ----------------------------- FPN forward -----------------------------------

def fpn_forward(inputs_nchw, params):
    """FPN forward (top_blocks=None). Inputs: NCHW feature maps fine->coarse."""
    cout = params["out_channels"]
    feats = [jnp.transpose(x, (0, 2, 3, 1)) for x in inputs_nchw]   # NHWC
    n_levels = len(feats)

    last_inner = conv1x1_bn(feats[-1], params["inner"][-1])
    results = [conv3x3_bn(last_inner, params["layer"][-1])]

    for lvl in range(n_levels - 2, -1, -1):
        feat = feats[lvl]
        if last_inner.shape[1:3] != feat.shape[1:3]:
            # fused: 2x bilinear upsample + lateral 1x1 conv + shift + add
            last_inner = topdown_fuse(feat, last_inner, params["inner"][lvl])
        else:
            # same resolution: fused lateral 1x1 conv + shift + residual add
            last_inner = conv1x1_bn(feat, params["inner"][lvl],
                                    residual=last_inner)
        results.insert(0, conv3x3_bn(last_inner, params["layer"][lvl]))

    # TODO(synk): top_blocks (LastLevelMaxPool / LastLevelP6P7) not implemented;
    # the FPN constructor default is top_blocks=None.
    return tuple(jnp.transpose(r[..., :cout], (0, 3, 1, 2)).astype(jnp.float32)
                 for r in results)


# ----------------------------- pure-JAX reference -----------------------------

def ref_fpn(inputs_nchw, params):
    feats = [jnp.transpose(x, (0, 2, 3, 1)) for x in inputs_nchw]
    n_levels = len(feats)

    def inner(x, p):
        w = p["w"]
        y = lax.conv_general_dilated(x, w.reshape(1, 1, *w.shape), (1, 1),
                                     [(0, 0), (0, 0)],
                                     dimension_numbers=("NHWC", "HWIO", "NHWC"))
        return y + p["t"]

    def layer(x, p):
        y = lax.conv_general_dilated(x, p["w"], (1, 1), [(1, 1), (1, 1)],
                                     dimension_numbers=("NHWC", "HWIO", "NHWC"))
        return y + p["t"]

    def up(li, hw):
        ah = _bilinear_matrix(hw[0], li.shape[1])
        aw = _bilinear_matrix(hw[1], li.shape[2])
        return jnp.einsum("Yy,Xx,nyxc->nYXc", ah, aw, li)

    last_inner = inner(feats[-1], params["inner"][-1])
    results = [layer(last_inner, params["layer"][-1])]
    for lvl in range(n_levels - 2, -1, -1):
        feat = feats[lvl]
        lat = inner(feat, params["inner"][lvl])
        if last_inner.shape[1:3] != feat.shape[1:3]:
            last_inner = up(last_inner, feat.shape[1:3])
        last_inner = lat + last_inner
        results.insert(0, layer(last_inner, params["layer"][lvl]))
    return tuple(jnp.transpose(r, (0, 3, 1, 2)) for r in results)


# ----------------------------- main -------------------------------------------

if __name__ == "__main__":
    in_channels_list = (4, 8, 16)   # C3, C4, C5-like backbone channels
    out_channels = 8
    input_shapes = [(2, 4, 16, 16), (2, 8, 8, 8), (2, 16, 4, 4)]  # NCHW fine->coarse

    key = jax.random.PRNGKey(0)
    key, *ks = jax.random.split(key, len(input_shapes) + 1)
    inputs = [jax.random.normal(k, s, jnp.float32) for k, s in zip(ks, input_shapes)]

    params = make_fpn_params(jax.random.PRNGKey(42), in_channels_list, out_channels)

    outs = jax.block_until_ready(fpn_forward(inputs, params))
    refs = jax.block_until_ready(ref_fpn(inputs, params))

    assert len(outs) == len(refs)
    for o, r in zip(outs, refs):
        assert o.shape == r.shape, (o.shape, r.shape)
        max_err = float(jnp.max(jnp.abs(o - r)))
        mean_err = float(jnp.mean(jnp.abs(o - r)))
        # bf16 activations + bf16 outputs through the 3-stage chain -> ~1%
        # expected discrepancy vs the f32 reference; a structurally wrong
        # kernel is O(0.3+) off.
        assert jnp.allclose(o, r, atol=5e-2, rtol=5e-2), (max_err, mean_err)
        assert mean_err < 3e-2, mean_err

    print("KERNEL_OK")
</pallas_src>

<mosaic_0001>
module attributes {stable_mosaic.version = 11 : i64} {
  func.func @_conv1x1_kernel(%arg0: i32, %arg1: i32, %arg2: memref<1x16x128xbf16, #tpu.memory_space<vmem>>, %arg3: memref<128x128xbf16, #tpu.memory_space<vmem>>, %arg4: memref<1x128xf32, #tpu.memory_space<vmem>>, %arg5: memref<1x16x128xbf16, #tpu.memory_space<vmem>>) attributes {dimension_semantics = [#tpu.dimension_semantics<parallel>, #tpu.dimension_semantics<parallel>], iteration_bounds = array<i64: 2, 1>, scalar_prefetch = 0 : i64, scratch_operands = 0 : i64, tpu.core_type = #tpu.core_type<tc>, window_params = [{transform_indices = @transform_0, window_bounds = array<i64: 1, 16, 128>}, {pipeline_mode = #tpu.pipeline_mode<synchronous>, transform_indices = @transform_1, window_bounds = array<i64: 128, 128>}, {pipeline_mode = #tpu.pipeline_mode<synchronous>, transform_indices = @transform_2, window_bounds = array<i64: 1, 128>}, {transform_indices = @transform_3, window_bounds = array<i64: 1, 16, 128>}]} {
    %c0 = arith.constant 0 : index
    %c0_0 = arith.constant 0 : index
    %c0_1 = arith.constant 0 : index
    %0 = vector.load %arg2[%c0, %c0_0, %c0_1] : memref<1x16x128xbf16, #tpu.memory_space<vmem>>, vector<1x16x128xbf16>
    %1 = vector.shape_cast %0 : vector<1x16x128xbf16> to vector<16x128xbf16>
    %c0_2 = arith.constant 0 : index
    %c0_3 = arith.constant 0 : index
    %2 = vector.load %arg3[%c0_2, %c0_3] : memref<128x128xbf16, #tpu.memory_space<vmem>>, vector<128x128xbf16>
    %cst = arith.constant dense<0.000000e+00> : vector<16x128xf32>
    %3 = tpu.matmul %1, %2, %cst {dimension_numbers = #tpu.dot_dimension_numbers<[1], [0], [0], [1], [0, 0, 1, 1], [], []>} : vector<16x128xbf16>, vector<128x128xbf16>, vector<16x128xf32> -> vector<16x128xf32>
    %c0_4 = arith.constant 0 : index
    %c0_5 = arith.constant 0 : index
    %4 = vector.load %arg4[%c0_4, %c0_5] : memref<1x128xf32, #tpu.memory_space<vmem>>, vector<1x128xf32>
    %5 = vector.broadcast %4 : vector<1x128xf32> to vector<16x128xf32>
    %6 = arith.addf %3, %5 : vector<16x128xf32>
    %7 = arith.truncf %6 : vector<16x128xf32> to vector<16x128xbf16>
    %c0_6 = arith.constant 0 : index
    %c0_7 = arith.constant 0 : index
    %c0_8 = arith.constant 0 : index
    %8 = vector.load %arg5[%c0_6, %c0_7, %c0_8] : memref<1x16x128xbf16, #tpu.memory_space<vmem>>, vector<1x16x128xbf16>
    %9 = vector.shape_cast %8 : vector<1x16x128xbf16> to vector<16x128xbf16>
    %10 = vector.shape_cast %7 : vector<16x128xbf16> to vector<1x16x128xbf16>
    tpu.vector_store %arg5[%c0_6, %c0_7, %c0_8], %10 {strides = array<i32>} : memref<1x16x128xbf16, #tpu.memory_space<vmem>>, vector<1x16x128xbf16>,
    return
  }
  func.func @transform_0(%arg0: i32, %arg1: i32) -> (i32, i32, i32) {
    %c0_i32 = arith.constant 0 : i32
    %c0_i32_0 = arith.constant 0 : i32
    return %arg0, %arg1, %c0_i32 : i32, i32, i32
  }
  func.func @transform_1(%arg0: i32, %arg1: i32) -> (i32, i32) {
    %c0_i32 = arith.constant 0 : i32
    %c0_i32_0 = arith.constant 0 : i32
    %c0_i32_1 = arith.constant 0 : i32
    return %c0_i32, %c0_i32_0 : i32, i32
  }
  func.func @transform_2(%arg0: i32, %arg1: i32) -> (i32, i32) {
    %c0_i32 = arith.constant 0 : i32
    %c0_i32_0 = arith.constant 0 : i32
    %c0_i32_1 = arith.constant 0 : i32
    return %c0_i32, %c0_i32_0 : i32, i32
  }
  func.func @transform_3(%arg0: i32, %arg1: i32) -> (i32, i32, i32) {
    %c0_i32 = arith.constant 0 : i32
    %c0_i32_0 = arith.constant 0 : i32
    return %arg0, %arg1, %c0_i32 : i32, i32, i32
  }
}

</mosaic_0001>

<llo_original>
// kernel: tpu_custom_call.1
$region0: #{tpu_custom_call.1}
  #allocation0 [shape = 'u32[]', space=smem, size = 0x4, offset = 0x4, fixed_abs, tag = 'smem constant byte address 0x4 - core index']
  #allocation1 [shape = 'u32[72,128]{1,0:T(1,128)}', space=vmem, size = 0x9000, scoped, tag = 'internal scratch']
  %s0 = inlined_call_operand.hbm [shape: bf16[2,16,128], index: 0, kind: input, shape index: {}]
  %s1 = inlined_call_operand.hbm [shape: bf16[128,128], index: 1, kind: input, shape index: {}]
  %s2 = inlined_call_operand.vmem [shape: f32[1,128], index: 2, kind: input, shape index: {}]
  %s3 = inlined_call_operand.hbm [shape: bf16[2,16,128], index: 3, kind: output, shape index: {}]
  %s4 = sld [smem:[#allocation0]]
  $region53: #{tpu_custom_call.1} parent=0
    _
  %s6 = ssub.s32 1, %s4
  %s7 = scalar_select 0, %s6, %s4
  $region1: #{tpu_custom_call.1} parent=0
    #allocation2 [shape = 'u8[8192]{0}', space=vmem, size = 0x2000, scoped, tag = 'input window, operand 0']
    #allocation3 [shape = 's32[2]{0}', space=sflag, size = 0x8, scoped, tag = 'scoped memory for tpu_custom_call.1']
    #allocation4 [shape = 's32[2]{0}', space=sflag, size = 0x8, scoped, tag = 'scoped memory for tpu_custom_call.1']
    #allocation5 [shape = 'u8[32768]{0}', space=vmem, size = 0x8000, scoped, tag = 'input window, operand 1, single buffered']
    #allocation6 [shape = 's32[1]{0}', space=sflag, size = 0x4, scoped, tag = 'scoped memory for tpu_custom_call.1']
    #allocation7 [shape = 'u8[8192]{0}', space=vmem, size = 0x2000, scoped, tag = 'output window, operand 0']
    %8 = vsyncpa [#allocation3], 0
    %s9 = scalar_lea.sflag [#allocation3], 1
    %10 = vsyncpa %s9, 0
    %11 = vsyncpa [#allocation6], 0
    %12 = vsyncpa [#allocation4], 0
    %s13 = scalar_lea.sflag [#allocation4], 1
    %14 = vsyncpa %s13, 0
    loop: start=0, step=1, limit=4
    $region2: #{tpu_custom_call.1} parent=1 // loop_pre_header
      _
    $region3: #{tpu_custom_call.1} parent=1 // loop_header
      %s16 = sphi 0, %s20
      %p17 = scmp.ge.s32.totalorder %s16, 4
      %s23 = sphi 0, %s35
      %s24 = sphi 0, %s31
      %s25 = sphi 0, %s23
      %s26 = sphi 0, %s24
      %s27 = sphi 0, %s25
      %s28 = sphi 0, %s26
      %s40 = sphi 0, %s42
      %s43 = sphi 0, %s40
      %s44 = sphi 0, %s43
      %s60 = sphi 0, %s44
      %s64 = sphi 0, %s64
      %s66 = sphi 0, %s64
      %s67 = sphi 0, %s66
      %s81 = sphi 0, %s67
      %s85 = sphi 0, %s85
      %s87 = sphi 0, %s85
      %s88 = sphi 0, %s87
      %s102 = sphi 0, %s88
      %s110 = sphi 0, %s112
      %s113 = sphi 0, %s110
      %s114 = sphi 0, %s113
      %s130 = sphi 0, %s114
    $region4: #{tpu_custom_call.1} parent=1 // loop_header_branch
      %19 = sbr.rel (%p17) target = $region8
    $region5: #{tpu_custom_call.1} parent=1 // loop_body
      %s21 = ssub.s32 %s16, 1
      %s22 = ssub.s32 %s16, 2
      %s29 = sadd.s32 1, %s24
      %p30 = scmp.ge.s32.totalorder %s29, 1
      %s31 = scalar_select %p30, 0, %s29
      %s32 = sadd.s32 1, %s23
      %s33 = scalar_select %p30, %s32, %s23
      %p34 = scmp.ge.s32.totalorder %s33, 2
      %s35 = scalar_select %p34, 0, %s33
      %s36 = ssub.s32 %s23, %s35
      %s37 = ssub.s32 %s24, %s31
      %s38 = sor.u32 %s36, %s37
      %p39 = scmp.eq.s32.totalorder %s38, 0
      %s41 = sadd.s32 %s40, 1
      %s42 = scalar_select %p39, %s40, %s41
      %p45 = pneg %p39
      %p46 = scmp.eq.s32.totalorder %s16, 1
      %p47 = por %p45, %p46
      %p48 = scmp.ne.s32.totalorder %s40, %s43
      %p49 = scmp.eq.s32.totalorder %s16, 0
      %p50 = por %p48, %p49
      %p51 = scmp.ne.s32.totalorder %s40, %s43
      %p52 = scmp.eq.s32.totalorder %s21, 1
      %p53 = por %p51, %p52
      %p54 = scmp.ne.s32.totalorder %s43, %s44
      %p55 = scmp.eq.s32.totalorder %s21, 0
      %p56 = por %p54, %p55
      %p57 = scmp.ne.s32.totalorder %s43, %s44
      %p58 = scmp.eq.s32.totalorder %s22, 1
      %p59 = por %p57, %p58
      %p61 = scmp.ne.s32.totalorder %s44, %s60
      %p62 = scmp.eq.s32.totalorder %s22, 0
      %p63 = por %p61, %p62
      %s65 = sadd.s32 %s64, 1
      %p68 = scmp.eq.s32.totalorder %s16, 1
      %p69 = scmp.ne.s32.totalorder %s64, %s66
      %p70 = scmp.eq.s32.totalorder %s16, 0
      %p71 = por %p69, %p70
      %p72 = scmp.ne.s32.totalorder %s64, %s66
      %p73 = scmp.eq.s32.totalorder %s21, 1
      %p74 = por %p72, %p73
      %p75 = scmp.ne.s32.totalorder %s66, %s67
      %p76 = scmp.eq.s32.totalorder %s21, 0
      %p77 = por %p75, %p76
      %p78 = scmp.ne.s32.totalorder %s66, %s67
      %p79 = scmp.eq.s32.totalorder %s22, 1
      %p80 = por %p78, %p79
      %p82 = scmp.ne.s32.totalorder %s67, %s81
      %p83 = scmp.eq.s32.totalorder %s22, 0
      %p84 = por %p82, %p83
      %s86 = sadd.s32 %s85, 1
      %p89 = scmp.eq.s32.totalorder %s16, 1
      %p90 = scmp.ne.s32.totalorder %s85, %s87
      %p91 = scmp.eq.s32.totalorder %s16, 0
      %p92 = por %p90, %p91
      %p93 = scmp.ne.s32.totalorder %s85, %s87
      %p94 = scmp.eq.s32.totalorder %s21, 1
      %p95 = por %p93, %p94
      %p96 = scmp.ne.s32.totalorder %s87, %s88
      %p97 = scmp.eq.s32.totalorder %s21, 0
      %p98 = por %p96, %p97
      %p99 = scmp.ne.s32.totalorder %s87, %s88
      %p100 = scmp.eq.s32.totalorder %s22, 1
      %p101 = por %p99, %p100
      %p103 = scmp.ne.s32.totalorder %s88, %s102
      %p104 = scmp.eq.s32.totalorder %s22, 0
      %p105 = por %p103, %p104
      %s106 = ssub.s32 %s23, %s35
      %s107 = ssub.s32 %s24, %s31
      %s108 = sor.u32 %s106, %s107
      %p109 = scmp.eq.s32.totalorder %s108, 0
      %s111 = sadd.s32 %s110, 1
      %s112 = scalar_select %p109, %s110, %s111
      %p115 = pneg %p109
      %p116 = scmp.eq.s32.totalorder %s16, 1
      %p117 = por %p115, %p116
      %p118 = scmp.ne.s32.totalorder %s110, %s113
      %p119 = scmp.eq.s32.totalorder %s16, 0
      %p120 = por %p118, %p119
      %p121 = scmp.ne.s32.totalorder %s110, %s113
      %p122 = scmp.eq.s32.totalorder %s21, 1
      %p123 = por %p121, %p122
      %p124 = scmp.ne.s32.totalorder %s113, %s114
      %p125 = scmp.eq.s32.totalorder %s21, 0
      %p126 = por %p124, %p125
      %p127 = scmp.ne.s32.totalorder %s113, %s114
      %p128 = scmp.eq.s32.totalorder %s22, 1
      %p129 = por %p127, %p128
      %p131 = scmp.ne.s32.totalorder %s114, %s130
      %p132 = scmp.eq.s32.totalorder %s22, 0
      %p133 = por %p131, %p132
      %p134 = scmp.le.s32.totalorder 1, %s16
      %p135 = scmp.lt.s32.totalorder %s16, 3
      %p136 = pnand %p134, %p135
      %p137 = pneg %p136
      // Predicated region
      $region9: #{tpu_custom_call.1} parent=5 // pred_check
        _
      $region10: #{tpu_custom_call.1} parent=5 // pred_check_branch
        %139 = sbr.rel (%p136) target = $region12
      $region11: #{tpu_custom_call.1} parent=5 // pred_region
        %s140 = ssub.s32 %s16, 1
        // Predicated region
        $region13: #{tpu_custom_call.1} parent=11 // pred_check
          %p141 = pneg %p77
        $region14: #{tpu_custom_call.1} parent=11 // pred_check_branch
          %143 = sbr.rel (%p141) target = $region16
        $region15: #{tpu_custom_call.1} parent=11 // pred_region
          %145 = vsyncadd [#allocation6], 0
          %s146 = sshll.u32 %s1, 4
          %s147 = int_to_ptr.hbm [resolvable:$true] %s146
          %s148 = sshll.u32 [#allocation5], 4
          %s149 = int_to_ptr.vmem [resolvable:$true] %s148
          %154 = dma.hbm_to_vmem [thread:$0]  %s147, 1024, %s149, [#allocation6], 64, 64, 4
        $region16: #{tpu_custom_call.1} parent=11 // pred_fallthru
          _
        // Predicated region
        $region17: #{tpu_custom_call.1} parent=11 // pred_check
          %p155 = pneg %p98
        $region18: #{tpu_custom_call.1} parent=11 // pred_check_branch
          %157 = sbr.rel (%p155) target = $region20
        $region19: #{tpu_custom_call.1} parent=11 // pred_region
          _
        $region20: #{tpu_custom_call.1} parent=11 // pred_fallthru
          _
      $region12: #{tpu_custom_call.1} parent=5 // pred_fallthru
        _
      %p158 = scmp.lt.s32.totalorder %s16, 2
      // Predicated region
      $region21: #{tpu_custom_call.1} parent=5 // pred_check
        %p159 = pneg %p158
      $region22: #{tpu_custom_call.1} parent=5 // pred_check_branch
        %161 = sbr.rel (%p159) target = $region24
      $region23: #{tpu_custom_call.1} parent=5 // pred_region
        // Predicated region
        $region25: #{tpu_custom_call.1} parent=23 // pred_check
          %p162 = pneg %p50
        $region26: #{tpu_custom_call.1} parent=23 // pred_check_branch
          %164 = sbr.rel (%p162) target = $region28
        $region27: #{tpu_custom_call.1} parent=23 // pred_region
          %s165 = sand.u32 %s40, 1
          %s166 = scalar_lea.sflag [#allocation3], %s165
          %s167 = sand.u32 %s40, 1
          %s168 = smul.addr %s167, 8
          %s169 = scalar_lea.vmem [#allocation2], %s168
          %s170 = smul.u32 2, %s24
          %172 = vsyncadd %s166, 0
          %s173 = smul.addr %s23, 2
          %s174 = sadd.s32 %s170, %s173
          %s175 = smul.addr %s174, 4
          %s176 = scalar_lea.hbm %s0, %s175
          %s177 = sshll.u32 %s176, 4
          %s178 = int_to_ptr.hbm [resolvable:$true] %s177
          %s179 = sshll.u32 %s169, 4
          %s180 = int_to_ptr.vmem [resolvable:$true] %s179
          %185 = dma.hbm_to_vmem [thread:$0]  %s178, 128, %s180, %s166, 64, 64, 4
        $region28: #{tpu_custom_call.1} parent=23 // pred_fallthru
          _
      $region24: #{tpu_custom_call.1} parent=5 // pred_fallthru
        _
      %p186 = scmp.le.s32.totalorder 1, %s16
      %p187 = scmp.lt.s32.totalorder %s16, 3
      %p188 = pnand %p186, %p187
      %p189 = pneg %p188
      // Predicated region
      $region29: #{tpu_custom_call.1} parent=5 // pred_check
        _
      $region30: #{tpu_custom_call.1} parent=5 // pred_check_branch
        %191 = sbr.rel (%p188) target = $region32
      $region31: #{tpu_custom_call.1} parent=5 // pred_region
        %s192 = ssub.s32 %s16, 1
        %s193 = sand.u32 %s43, 1
        %s194 = scalar_lea.sflag [#allocation3], %s193
        %s195 = sand.u32 %s43, 1
        %s196 = smul.addr %s195, 8
        %s197 = scalar_lea.vmem [#allocation2], %s196
        // Predicated region
        $region33: #{tpu_custom_call.1} parent=31 // pred_check
          %p198 = pneg %p56
        $region34: #{tpu_custom_call.1} parent=31 // pred_check_branch
          %200 = sbr.rel (%p198) target = $region36
        $region35: #{tpu_custom_call.1} parent=31 // pred_region
          %202 = dma.done %s194, 128
        $region36: #{tpu_custom_call.1} parent=31 // pred_fallthru
          _
        // Predicated region
        $region37: #{tpu_custom_call.1} parent=31 // pred_check
          %p203 = pneg %p77
        $region38: #{tpu_custom_call.1} parent=31 // pred_check_branch
          %205 = sbr.rel (%p203) target = $region40
        $region39: #{tpu_custom_call.1} parent=31 // pred_region
          %207 = dma.done [#allocation6], 1024
        $region40: #{tpu_custom_call.1} parent=31 // pred_fallthru
          _
        %s208 = sand.u32 %s43, 1
        %s209 = scalar_lea.sflag [#allocation3], %s208
        %s210 = sand.u32 %s43, 1
        %s211 = smul.addr %s210, 8
        %s212 = scalar_lea.vmem [#allocation2], %s211
        %p213 = pneg %p56
        %p214 = pneg %p53
        %p215 = pneg %p77
        %p216 = pneg %p74
        %p217 = pneg %p98
        %p218 = pneg %p95
        %p219 = pneg %p126
        %p220 = pneg %p123
        %s221 = sand.u32 %s113, 1
        %s222 = scalar_lea.sflag [#allocation4], %s221
        %s223 = sand.u32 %s113, 1
        %s224 = smul.addr %s223, 8
        %s225 = scalar_lea.vmem [#allocation7], %s224
        %s226 = smul.u32 2, %s26
        %s227 = smul.u32 2, %s26
        %v228 = vld [vmem:[%s197] sm:$0xf]
        %v229 = vld [vmem:[%s197 + $0x4] sm:$0xf]
        %v230 = vld [vmem:[#allocation5] sm:$0xf]
        %v231 = vld [vmem:[#allocation5 + $0x4] sm:$0xf]
        %v232 = vld [vmem:[#allocation5 + $0x8] sm:$0xf]
        %v233 = vld [vmem:[#allocation5 + $0xc] sm:$0xf]
        %v234 = vld [vmem:[#allocation5 + $0x10] sm:$0xf]
        %v235 = vld [vmem:[#allocation5 + $0x14] sm:$0xf]
        %v236 = vld [vmem:[#allocation5 + $0x18] sm:$0xf]
        %v237 = vld [vmem:[#allocation5 + $0x1c] sm:$0xf]
        %v238 = vld [vmem:[#allocation5 + $0x20] sm:$0xf]
        %v239 = vld [vmem:[#allocation5 + $0x24] sm:$0xf]
        %v240 = vld [vmem:[#allocation5 + $0x28] sm:$0xf]
        %v241 = vld [vmem:[#allocation5 + $0x2c] sm:$0xf]
        %v242 = vld [vmem:[#allocation5 + $0x30] sm:$0xf]
        %v243 = vld [vmem:[#allocation5 + $0x34] sm:$0xf]
        %v244 = vld [vmem:[#allocation5 + $0x38] sm:$0xf]
        %v245 = vld [vmem:[#allocation5 + $0x3c] sm:$0xf]
        %v246 = vld [vmem:[%s2] sm:$0x1]
        %v248 = vperm.slane %v246, 0
        %v252 = vunpack.c.l.b16 %v228
        %v253 = vunpack.c.l.b16 %v229
        %v254 = vpack.c.b16 %v253, %v252
        %v272 = vunpack.c.l.b16 %v230
        %v273 = vunpack.c.l.b16 %v231
        %v274 = vunpack.c.l.b16 %v232
        %v275 = vunpack.c.l.b16 %v233
        %v276 = vunpack.c.l.b16 %v234
        %v277 = vunpack.c.l.b16 %v235
        %v278 = vunpack.c.l.b16 %v236
        %v279 = vunpack.c.l.b16 %v237
        %v280 = vunpack.c.l.b16 %v238
        %v281 = vunpack.c.l.b16 %v239
        %v282 = vunpack.c.l.b16 %v240
        %v283 = vunpack.c.l.b16 %v241
        %v284 = vunpack.c.l.b16 %v242
        %v285 = vunpack.c.l.b16 %v243
        %v286 = vunpack.c.l.b16 %v244
        %v287 = vunpack.c.l.b16 %v245
        %v288 = vpack.c.b16 %v273, %v272
        %v289 = vpack.c.b16 %v275, %v274
        %v290 = vpack.c.b16 %v277, %v276
        %v291 = vpack.c.b16 %v279, %v278
        %v292 = vpack.c.b16 %v281, %v280
        %v293 = vpack.c.b16 %v283, %v282
        %v294 = vpack.c.b16 %v285, %v284
        %v295 = vpack.c.b16 %v287, %v286
        %304 = vmatpush.bf16.msra.mxu0 %v295
        %305 = vmatpush.bf16.msra.mxu0 %v294
        %306 = vmatpush.bf16.msra.mxu0 %v293
        %307 = vmatpush.bf16.msra.mxu0 %v292
        %308 = vmatpush.bf16.msra.mxu0 %v291
        %309 = vmatpush.bf16.msra.mxu0 %v290
        %310 = vmatpush.bf16.msra.mxu0 %v289
        %311 = vmatpush.bf16.msra.mxu0 %v288
        %312 = vmatmul.bf16.gmra.mxu0 %v254
        %v313 = vpop.f32.mrf.mxu0
        %v314 = vadd.f32 %v248, %v313
        %v315 = vpop.f32.mrf.mxu0
        %v316 = vadd.f32 %v248, %v315
        %317 = vdwg.mxu0
        %v318 = vpack.c.bf16 %v314, %v314
        %v319 = vpack.c.bf16 %v316, %v316
        %320 = vst [vmem:[%s225] sm:$0xf] %v318
        %321 = vst [vmem:[%s225 + $0x4] sm:$0xf] %v319
        %s322 = sand.u32 %s113, 1
        %s323 = scalar_lea.sflag [#allocation4], %s322
        %s324 = sand.u32 %s113, 1
        %s325 = smul.addr %s324, 8
        %s326 = scalar_lea.vmem [#allocation7], %s325
        // Predicated region
        $region41: #{tpu_custom_call.1} parent=31 // pred_check
          %p327 = pneg %p123
        $region42: #{tpu_custom_call.1} parent=31 // pred_check_branch
          %329 = sbr.rel (%p327) target = $region44
        $region43: #{tpu_custom_call.1} parent=31 // pred_region
          %s330 = smul.u32 2, %s26
          %332 = vsyncadd %s323, 0
          %s333 = smul.addr %s25, 2
          %s334 = sadd.s32 %s330, %s333
          %s335 = smul.addr %s334, 4
          %s336 = scalar_lea.hbm %s3, %s335
          %s337 = sshll.u32 %s326, 4
          %s338 = int_to_ptr.vmem [resolvable:$true] %s337
          %s339 = sshll.u32 %s336, 4
          %s340 = int_to_ptr.hbm [resolvable:$true] %s339
          %345 = dma.vmem_to_hbm [thread:$0]  %s338, 128, %s340, %s323, 64, 64, 4
        $region44: #{tpu_custom_call.1} parent=31 // pred_fallthru
          _
      $region32: #{tpu_custom_call.1} parent=5 // pred_fallthru
        _
      %p346 = scmp.le.s32.totalorder 2, %s16
      // Predicated region
      $region45: #{tpu_custom_call.1} parent=5 // pred_check
        %p347 = pneg %p346
      $region46: #{tpu_custom_call.1} parent=5 // pred_check_branch
        %349 = sbr.rel (%p347) target = $region48
      $region47: #{tpu_custom_call.1} parent=5 // pred_region
        %s350 = ssub.s32 %s16, 2
        // Predicated region
        $region49: #{tpu_custom_call.1} parent=47 // pred_check
          %p351 = pneg %p129
        $region50: #{tpu_custom_call.1} parent=47 // pred_check_branch
          %353 = sbr.rel (%p351) target = $region52
        $region51: #{tpu_custom_call.1} parent=47 // pred_region
          %s354 = sand.u32 %s114, 1
          %s355 = scalar_lea.sflag [#allocation4], %s354
          %s356 = sand.u32 %s114, 1
          %s357 = smul.addr %s356, 8
          %s358 = scalar_lea.vmem [#allocation7], %s357
          %360 = dma.done %s355, 128
        $region52: #{tpu_custom_call.1} parent=47 // pred_fallthru
          _
      $region48: #{tpu_custom_call.1} parent=5 // pred_fallthru
        _
    $region6: #{tpu_custom_call.1} parent=1 // loop_footer
      %s20 = sadd.s32 1, %s16
    $region7: #{tpu_custom_call.1} parent=1 // loop_footer_branch
      %15 = sbr.rel target = $region3
    $region8: #{tpu_custom_call.1} parent=1 // loop_exit
      _
    %361 = vsyncpa [#allocation3], 1
    %s362 = scalar_lea.sflag [#allocation3], 1
    %363 = vsyncpa %s362, 1
    %364 = vsyncpa [#allocation6], 1
    %365 = vsyncpa [#allocation4], 1
    %s366 = scalar_lea.sflag [#allocation4], 1
    %367 = vsyncpa %s366, 1

</llo_original>
